<compile_context>
chip_gen: v7x
topology: tpu7x:2x2x1
jax: 0.10.0
libtpu: 0.0.40
codegen_flags: <defaults>
</compile_context>

<pallas_src>
import functools

import jax
import jax.numpy as jnp
from jax.experimental import pallas as pl
from jax.experimental.pallas import tpu as pltpu

_LANES = 128


def _pce_kernel(w_ref, x_ref, t_ref, num_ref, den_ref, num_acc, den_acc, *,
                inv_temperature):
    j = pl.program_id(2)

    @pl.when(j == 0)
    def _():
        num_acc[...] = jnp.zeros_like(num_acc)
        den_acc[...] = jnp.zeros_like(den_acc)

    # Logits tile: (C, R_tile, 128) -- classes on the leading axis, every
    # per-class plane is a full set of 8x128 vregs.
    x = x_ref[0].astype(jnp.float32)
    if inv_temperature != 1.0:
        x = x * inv_temperature
    t = t_ref[0, 0]                                        # (R_tile, 128) int32

    # log-softmax over the class axis: pure elementwise vreg ops.
    m = jnp.max(x, axis=0)                                 # (R_tile, 128)
    xs = x - m[None]                                       # (C, R_tile, 128)
    s = jnp.log(jnp.sum(jnp.exp(xs), axis=0))              # (R_tile, 128)  lse - m

    # One shared one-hot compare gathers both x[t]-m and weight[t]; the full
    # logp tensor and a C-wide multiply are never materialized.
    cls = jax.lax.broadcasted_iota(jnp.int32, x.shape, 0)  # (C, R_tile, 128)
    onehot = cls == t[None]
    xt_m = jnp.sum(jnp.where(onehot, xs, 0.0), axis=0)     # x[t] - m
    w_t = jnp.sum(jnp.where(onehot, w_ref[...], 0.0), axis=0)   # weight[t]

    logp_t = xt_m - s                                      # log_softmax(x)[t]
    t_f = t.astype(jnp.float32)                            # partialLossMask = targets.float()

    # Padded pixels carry target 0 -> t_f == 0 -> contribute nothing.
    num_acc[...] += (-w_t * logp_t) * t_f
    den_acc[...] += t_f

    # Single cross-lane reduction per (image, chunk), written at the last tile.
    @pl.when(j == pl.num_programs(2) - 1)
    def _():
        num_ref[...] = jnp.broadcast_to(jnp.sum(num_acc[...]), num_ref.shape)
        den_ref[...] = jnp.broadcast_to(jnp.sum(den_acc[...]), den_ref.shape)


def partial_cross_entropy_loss_2d(outputs, targets, weight, temperature=1.0,
                                  tile_rows=None, pixel_parallel=None):
    """outputs: (N, C, H, W) float; targets: (N, H, W) int; weight: (C,) float."""
    N, C, H, W = outputs.shape
    HW = H * W
    R = int(pl.cdiv(HW, _LANES))                 # 128-pixel rows

    # Tile = tile_rows x 128 pixels, capped at 8192 pixels (already ~HBM
    # roofline, keeps VMEM headroom on v7x).  tile_rows must be a multiple of
    # 8 unless it equals the full row count.
    if tile_rows is None:
        tile_rows = 64
    if R <= tile_rows:
        tile_rows = R
    else:
        tile_rows = max(8, (int(tile_rows) // 8) * 8)
    n_tiles = int(pl.cdiv(R, tile_rows))

    # Optional pixel-chunk parallel axis: keeps both TensorCores of a v7x chip
    # busy when the batch is tiny; neutral on single-TC v5e/v6e.
    if pixel_parallel is None:
        pixel_parallel = 1 if N >= 2 else min(2, n_tiles)
    P = max(1, int(pixel_parallel))
    T = int(pl.cdiv(n_tiles, P))                 # reduction tiles per chunk
    R_pad = P * T * tile_rows
    HW_pad = R_pad * _LANES

    # Free views of the NCHW layout; cast targets only if needed (no hidden
    # extra HBM pass when they already arrive as int32).
    x = outputs.reshape(N, C, HW)
    t = targets.reshape(N, HW)
    if t.dtype != jnp.int32:
        t = t.astype(jnp.int32)
    if HW_pad != HW:
        # One-time zero pad; padded pixels have target 0 -> zero contribution,
        # so the kernel needs no ragged masking at all.
        x = jnp.pad(x, ((0, 0), (0, 0), (0, HW_pad - HW)))
        t = jnp.pad(t, ((0, 0), (0, HW_pad - HW)))
    x = x.reshape(N, C, R_pad, _LANES)
    t = t.reshape(N, 1, R_pad, _LANES)
    w = weight.reshape(C, 1, 1).astype(jnp.float32)

    kernel = functools.partial(_pce_kernel,
                               inv_temperature=float(1.0 / temperature))

    num, den = pl.pallas_call(
        kernel,
        out_shape=(jax.ShapeDtypeStruct((N, P, 8, _LANES), jnp.float32),
                   jax.ShapeDtypeStruct((N, P, 8, _LANES), jnp.float32)),
        grid_spec=pltpu.PrefetchScalarGridSpec(
            num_scalar_prefetch=0,
            grid=(N, P, T),
            in_specs=[
                pl.BlockSpec((C, 1, 1), lambda n, p, j: (0, 0, 0)),       # class weights
                pl.BlockSpec((1, C, tile_rows, _LANES),
                             lambda n, p, j: (n, 0, p * T + j, 0)),       # logits (NCHW view)
                pl.BlockSpec((1, 1, tile_rows, _LANES),
                             lambda n, p, j: (n, 0, p * T + j, 0)),       # targets
            ],
            out_specs=[
                pl.BlockSpec((1, 1, 8, _LANES), lambda n, p, j: (n, p, 0, 0)),
                pl.BlockSpec((1, 1, 8, _LANES), lambda n, p, j: (n, p, 0, 0)),
            ],
            scratch_shapes=[
                pltpu.VMEM((tile_rows, _LANES), jnp.float32),             # num partials
                pltpu.VMEM((tile_rows, _LANES), jnp.float32),             # den partials
            ],
        ),
        compiler_params=pltpu.CompilerParams(
            dimension_semantics=("parallel", "parallel", "arbitrary"),
            vmem_limit_bytes=32 * 1024 * 1024),
    )(w, x, t)

    num_total = jnp.sum(num[:, :, 0, 0])
    den_total = jnp.sum(den[:, :, 0, 0])
    # partialLoss = (el * mask).sum() / targets.sum().float()
    # (NaN if targets.sum() == 0 -- matches the PyTorch module, which only `pass`es.)
    return num_total / den_total


def _reference(outputs, targets, weight, temperature=1.0):
    """Pure-JAX reference mirroring the PyTorch forward."""
    x = outputs.astype(jnp.float32) / temperature
    logp = jax.nn.log_softmax(x, axis=1)                          # (N, C, H, W)
    logp_t = jnp.take_along_axis(logp, targets[:, None].astype(jnp.int32),
                                 axis=1)[:, 0]                    # (N, H, W)
    w_t = weight[targets]                                         # (N, H, W)
    el = -w_t * logp_t
    mask = targets.astype(jnp.float32)
    return (el * mask).sum() / targets.sum().astype(jnp.float32)


if __name__ == "__main__":
    key = jax.random.PRNGKey(0)
    k1, k2 = jax.random.split(key)

    N, C, H, W = 2, 4, 16, 16
    outputs = jax.random.normal(k1, (N, C, H, W), dtype=jnp.float32)
    targets = jax.random.randint(k2, (N, H, W), 0, C, dtype=jnp.int32)
    # Deterministic per-class weights (module __init__ takes `weight` of shape (C,)).
    weight = jnp.array([0.5, 1.0, 1.5, 2.0], dtype=jnp.float32)
    temperature = 1.0

    loss = partial_cross_entropy_loss_2d(outputs, targets, weight, temperature)
    loss = jax.block_until_ready(loss)

    ref = _reference(outputs, targets, weight, temperature)
    assert jnp.allclose(loss, ref, rtol=1e-5, atol=1e-5), (loss, ref)

    print("KERNEL_OK")
</pallas_src>

<mosaic_0001>
module attributes {stable_mosaic.version = 11 : i64} {
  func.func @_pce_kernel(%arg0: i32, %arg1: i32, %arg2: i32, %arg3: memref<4x1x1xf32, #tpu.memory_space<vmem>>, %arg4: memref<1x4x2x128xf32, #tpu.memory_space<vmem>>, %arg5: memref<1x1x2x128xi32, #tpu.memory_space<vmem>>, %arg6: memref<1x1x8x128xf32, #tpu.memory_space<vmem>>, %arg7: memref<1x1x8x128xf32, #tpu.memory_space<vmem>>, %arg8: memref<2x128xf32, #tpu.memory_space<vmem>>, %arg9: memref<2x128xf32, #tpu.memory_space<vmem>>) attributes {dimension_semantics = [#tpu.dimension_semantics<parallel>, #tpu.dimension_semantics<parallel>, #tpu.dimension_semantics<arbitrary>], iteration_bounds = array<i64: 2, 1, 1>, scalar_prefetch = 0 : i64, scratch_operands = 2 : i64, tpu.core_type = #tpu.core_type<tc>, window_params = [{pipeline_mode = #tpu.pipeline_mode<synchronous>, transform_indices = @transform_0, window_bounds = array<i64: 4, 1, 1>}, {transform_indices = @transform_1, window_bounds = array<i64: 1, 4, 2, 128>}, {transform_indices = @transform_2, window_bounds = array<i64: 1, 1, 2, 128>}, {transform_indices = @transform_3, window_bounds = array<i64: 1, 1, 8, 128>}, {transform_indices = @transform_4, window_bounds = array<i64: 1, 1, 8, 128>}]} {
    %c0_i32 = arith.constant 0 : i32
    %0 = arith.cmpi eq, %arg2, %c0_i32 : i32
    %1 = arith.extui %0 : i1 to i32
    %c0_i32_0 = arith.constant 0 : i32
    %2 = arith.cmpi ne, %1, %c0_i32_0 : i32
    scf.if %2 {
      %cst_27 = arith.constant 0.000000e+00 : f32
      %42 = vector.broadcast %cst_27 : f32 to vector<2x128xf32>
      %c0_28 = arith.constant 0 : index
      %c0_29 = arith.constant 0 : index
      %43 = vector.load %arg8[%c0_28, %c0_29] : memref<2x128xf32, #tpu.memory_space<vmem>>, vector<2x128xf32>
      tpu.vector_store %arg8[%c0_28, %c0_29], %42 {strides = array<i32>} : memref<2x128xf32, #tpu.memory_space<vmem>>, vector<2x128xf32>,
      %cst_30 = arith.constant 0.000000e+00 : f32
      %44 = vector.broadcast %cst_30 : f32 to vector<2x128xf32>
      %c0_31 = arith.constant 0 : index
      %c0_32 = arith.constant 0 : index
      %45 = vector.load %arg9[%c0_31, %c0_32] : memref<2x128xf32, #tpu.memory_space<vmem>>, vector<2x128xf32>
      tpu.vector_store %arg9[%c0_31, %c0_32], %44 {strides = array<i32>} : memref<2x128xf32, #tpu.memory_space<vmem>>, vector<2x128xf32>,
    } else {
    }
    %c0 = arith.constant 0 : index
    %c0_1 = arith.constant 0 : index
    %c0_2 = arith.constant 0 : index
    %c0_3 = arith.constant 0 : index
    %3 = vector.load %arg4[%c0, %c0_1, %c0_2, %c0_3] : memref<1x4x2x128xf32, #tpu.memory_space<vmem>>, vector<1x4x2x128xf32>
    %4 = vector.shape_cast %3 : vector<1x4x2x128xf32> to vector<4x2x128xf32>
    %c0_4 = arith.constant 0 : index
    %c0_5 = arith.constant 0 : index
    %c0_6 = arith.constant 0 : index
    %c0_7 = arith.constant 0 : index
    %5 = vector.load %arg5[%c0_4, %c0_5, %c0_6, %c0_7] : memref<1x1x2x128xi32, #tpu.memory_space<vmem>>, vector<1x1x2x128xi32>
    %6 = vector.shape_cast %5 : vector<1x1x2x128xi32> to vector<2x128xi32>
    %cst = arith.constant dense<0xFF800000> : vector<2x128xf32>
    %7 = vector.multi_reduction <maximumf>, %4, %cst [0] : vector<4x2x128xf32> to vector<2x128xf32>
    %8 = vector.shape_cast %7 : vector<2x128xf32> to vector<1x2x128xf32>
    %9 = vector.broadcast %8 : vector<1x2x128xf32> to vector<4x2x128xf32>
    %10 = arith.subf %4, %9 : vector<4x2x128xf32>
    %11 = math.exp %10 : vector<4x2x128xf32>
    %cst_8 = arith.constant dense<0.000000e+00> : vector<2x128xf32>
    %12 = vector.multi_reduction <add>, %11, %cst_8 [0] : vector<4x2x128xf32> to vector<2x128xf32>
    %13 = math.log %12 : vector<2x128xf32>
    %14 = tpu.iota {dimensions = array<i32: 0>} : vector<4x2x128xi32>
    %15 = vector.shape_cast %6 : vector<2x128xi32> to vector<1x2x128xi32>
    %16 = vector.broadcast %15 : vector<1x2x128xi32> to vector<4x2x128xi32>
    %17 = arith.cmpi eq, %14, %16 : vector<4x2x128xi32>
    %cst_9 = arith.constant 0.000000e+00 : f32
    %18 = vector.broadcast %cst_9 : f32 to vector<4x2x128xf32>
    %19 = arith.select %17, %10, %18 : vector<4x2x128xi1>, vector<4x2x128xf32>
    %cst_10 = arith.constant dense<0.000000e+00> : vector<2x128xf32>
    %20 = vector.multi_reduction <add>, %19, %cst_10 [0] : vector<4x2x128xf32> to vector<2x128xf32>
    %c0_11 = arith.constant 0 : index
    %c0_12 = arith.constant 0 : index
    %c0_13 = arith.constant 0 : index
    %21 = vector.load %arg3[%c0_11, %c0_12, %c0_13] : memref<4x1x1xf32, #tpu.memory_space<vmem>>, vector<4x1x1xf32>
    %cst_14 = arith.constant 0.000000e+00 : f32
    %22 = vector.shape_cast %21 : vector<4x1x1xf32> to vector<4x1x1xf32>
    %23 = vector.broadcast %22 : vector<4x1x1xf32> to vector<4x2x128xf32>
    %24 = vector.broadcast %cst_14 : f32 to vector<4x2x128xf32>
    %25 = arith.select %17, %23, %24 : vector<4x2x128xi1>, vector<4x2x128xf32>
    %cst_15 = arith.constant dense<0.000000e+00> : vector<2x128xf32>
    %26 = vector.multi_reduction <add>, %25, %cst_15 [0] : vector<4x2x128xf32> to vector<2x128xf32>
    %27 = arith.subf %20, %13 : vector<2x128xf32>
    %28 = arith.sitofp %6 : vector<2x128xi32> to vector<2x128xf32>
    %c0_16 = arith.constant 0 : index
    %c0_17 = arith.constant 0 : index
    %29 = vector.load %arg8[%c0_16, %c0_17] : memref<2x128xf32, #tpu.memory_space<vmem>>, vector<2x128xf32>
    %cst_18 = arith.constant 0.000000e+00 : f32
    %30 = vector.broadcast %cst_18 : f32 to vector<2x128xf32>
    %31 = arith.subf %30, %26 : vector<2x128xf32>
    %32 = arith.mulf %31, %27 : vector<2x128xf32>
    %33 = arith.mulf %32, %28 : vector<2x128xf32>
    %34 = arith.addf %29, %33 : vector<2x128xf32>
    %c0_19 = arith.constant 0 : index
    %c0_20 = arith.constant 0 : index
    %35 = vector.load %arg8[%c0_19, %c0_20] : memref<2x128xf32, #tpu.memory_space<vmem>>, vector<2x128xf32>
    tpu.vector_store %arg8[%c0_19, %c0_20], %34 {strides = array<i32>} : memref<2x128xf32, #tpu.memory_space<vmem>>, vector<2x128xf32>,
    %c0_21 = arith.constant 0 : index
    %c0_22 = arith.constant 0 : index
    %36 = vector.load %arg9[%c0_21, %c0_22] : memref<2x128xf32, #tpu.memory_space<vmem>>, vector<2x128xf32>
    %37 = arith.addf %36, %28 : vector<2x128xf32>
    %c0_23 = arith.constant 0 : index
    %c0_24 = arith.constant 0 : index
    %38 = vector.load %arg9[%c0_23, %c0_24] : memref<2x128xf32, #tpu.memory_space<vmem>>, vector<2x128xf32>
    tpu.vector_store %arg9[%c0_23, %c0_24], %37 {strides = array<i32>} : memref<2x128xf32, #tpu.memory_space<vmem>>, vector<2x128xf32>,
    %c0_i32_25 = arith.constant 0 : i32
    %39 = arith.cmpi eq, %arg2, %c0_i32_25 : i32
    %40 = arith.extui %39 : i1 to i32
    %c0_i32_26 = arith.constant 0 : i32
    %41 = arith.cmpi ne, %40, %c0_i32_26 : i32
    scf.if %41 {
      %c0_27 = arith.constant 0 : index
      %c0_28 = arith.constant 0 : index
      %42 = vector.load %arg8[%c0_27, %c0_28] : memref<2x128xf32, #tpu.memory_space<vmem>>, vector<2x128xf32>
      %43 = vector.shape_cast %42 : vector<2x128xf32> to vector<1x2x128xf32>
      %cst_29 = arith.constant dense<0.000000e+00> : vector<1xf32>
      %44 = vector.multi_reduction <add>, %43, %cst_29 [1, 2] : vector<1x2x128xf32> to vector<1xf32>
      %45 = vector.shape_cast %44 : vector<1xf32> to vector<1x1x1xf32>
      %46 = vector.extract %45[0, 0, 0] : f32 from vector<1x1x1xf32>
      %47 = vector.broadcast %46 : f32 to vector<1x1x8x128xf32>
      %c0_30 = arith.constant 0 : index
      %c0_31 = arith.constant 0 : index
      %c0_32 = arith.constant 0 : index
      %c0_33 = arith.constant 0 : index
      %48 = vector.load %arg6[%c0_30, %c0_31, %c0_32, %c0_33] : memref<1x1x8x128xf32, #tpu.memory_space<vmem>>, vector<1x1x8x128xf32>
      tpu.vector_store %arg6[%c0_30, %c0_31, %c0_32, %c0_33], %47 {strides = array<i32>} : memref<1x1x8x128xf32, #tpu.memory_space<vmem>>, vector<1x1x8x128xf32>,
      %c0_34 = arith.constant 0 : index
      %c0_35 = arith.constant 0 : index
      %49 = vector.load %arg9[%c0_34, %c0_35] : memref<2x128xf32, #tpu.memory_space<vmem>>, vector<2x128xf32>
      %50 = vector.shape_cast %49 : vector<2x128xf32> to vector<1x2x128xf32>
      %cst_36 = arith.constant dense<0.000000e+00> : vector<1xf32>
      %51 = vector.multi_reduction <add>, %50, %cst_36 [1, 2] : vector<1x2x128xf32> to vector<1xf32>
      %52 = vector.shape_cast %51 : vector<1xf32> to vector<1x1x1xf32>
      %53 = vector.extract %52[0, 0, 0] : f32 from vector<1x1x1xf32>
      %54 = vector.broadcast %53 : f32 to vector<1x1x8x128xf32>
      %c0_37 = arith.constant 0 : index
      %c0_38 = arith.constant 0 : index
      %c0_39 = arith.constant 0 : index
      %c0_40 = arith.constant 0 : index
      %55 = vector.load %arg7[%c0_37, %c0_38, %c0_39, %c0_40] : memref<1x1x8x128xf32, #tpu.memory_space<vmem>>, vector<1x1x8x128xf32>
      tpu.vector_store %arg7[%c0_37, %c0_38, %c0_39, %c0_40], %54 {strides = array<i32>} : memref<1x1x8x128xf32, #tpu.memory_space<vmem>>, vector<1x1x8x128xf32>,
    } else {
    }
    return
  }
  func.func @transform_0(%arg0: i32, %arg1: i32, %arg2: i32) -> (i32, i32, i32) {
    %c0_i32 = arith.constant 0 : i32
    %c0_i32_0 = arith.constant 0 : i32
    %c0_i32_1 = arith.constant 0 : i32
    %c0_i32_2 = arith.constant 0 : i32
    return %c0_i32, %c0_i32_0, %c0_i32_1 : i32, i32, i32
  }
  func.func @transform_1(%arg0: i32, %arg1: i32, %arg2: i32) -> (i32, i32, i32, i32) {
    %c1_i32 = arith.constant 1 : i32
    %0 = arith.muli %arg1, %c1_i32 : i32
    %1 = arith.addi %0, %arg2 : i32
    %c0_i32 = arith.constant 0 : i32
    %c0_i32_0 = arith.constant 0 : i32
    %c0_i32_1 = arith.constant 0 : i32
    return %arg0, %c0_i32, %1, %c0_i32_0 : i32, i32, i32, i32
  }
  func.func @transform_2(%arg0: i32, %arg1: i32, %arg2: i32) -> (i32, i32, i32, i32) {
    %c1_i32 = arith.constant 1 : i32
    %0 = arith.muli %arg1, %c1_i32 : i32
    %1 = arith.addi %0, %arg2 : i32
    %c0_i32 = arith.constant 0 : i32
    %c0_i32_0 = arith.constant 0 : i32
    %c0_i32_1 = arith.constant 0 : i32
    return %arg0, %c0_i32, %1, %c0_i32_0 : i32, i32, i32, i32
  }
  func.func @transform_3(%arg0: i32, %arg1: i32, %arg2: i32) -> (i32, i32, i32, i32) {
    %c0_i32 = arith.constant 0 : i32
    %c0_i32_0 = arith.constant 0 : i32
    %c0_i32_1 = arith.constant 0 : i32
    return %arg0, %arg1, %c0_i32, %c0_i32_0 : i32, i32, i32, i32
  }
  func.func @transform_4(%arg0: i32, %arg1: i32, %arg2: i32) -> (i32, i32, i32, i32) {
    %c0_i32 = arith.constant 0 : i32
    %c0_i32_0 = arith.constant 0 : i32
    %c0_i32_1 = arith.constant 0 : i32
    return %arg0, %arg1, %c0_i32, %c0_i32_0 : i32, i32, i32, i32
  }
}

</mosaic_0001>

<llo_original>
// kernel: tpu_custom_call.1
$region0: #{tpu_custom_call.1}
  #allocation0 [shape = 'u32[]', space=smem, size = 0x4, offset = 0x4, fixed_abs, tag = 'smem constant byte address 0x4 - core index']
  #allocation1 [shape = 'u32[144,128]{1,0:T(1,128)}', space=vmem, size = 0x12000, scoped, tag = 'internal scratch']
  #allocation2 [shape = 'f32[2,128]{1,0:T(2,128)}', space=vmem, size = 0x400, scoped, tag = 'scratch operand']
  #allocation3 [shape = 'f32[2,128]{1,0:T(2,128)}', space=vmem, size = 0x400, scoped, tag = 'scratch operand']
  %s0 = inlined_call_operand.vmem [shape: f32[4,1,1], index: 0, kind: input, shape index: {}]
  %s1 = inlined_call_operand.hbm [shape: f32[2,4,2,128], index: 1, kind: input, shape index: {}]
  %s2 = inlined_call_operand.vmem [shape: s32[2,1,2,128], index: 2, kind: input, shape index: {}]
  %s3 = inlined_call_operand.hbm [shape: f32[2,1,8,128], index: 3, kind: output, shape index: {0}]
  %s4 = inlined_call_operand.hbm [shape: f32[2,1,8,128], index: 4, kind: output, shape index: {1}]
  %5 = xla_tuple %s3, %s4
  %s6 = sld [smem:[#allocation0]]
  $region65: #{tpu_custom_call.1} parent=0
    _
  %s8 = ssub.s32 1, %s6
  %s9 = scalar_select 0, %s8, %s6
  $region1: #{tpu_custom_call.1} parent=0
    #allocation4 [shape = 'u8[8192]{0}', space=vmem, size = 0x2000, scoped, tag = 'input window, operand 1']
    #allocation5 [shape = 's32[2]{0}', space=sflag, size = 0x8, scoped, tag = 'scoped memory for tpu_custom_call.1']
    #allocation6 [shape = 's32[2]{0}', space=sflag, size = 0x8, scoped, tag = 'scoped memory for tpu_custom_call.1']
    #allocation7 [shape = 'u8[8192]{0}', space=vmem, size = 0x2000, scoped, tag = 'output window, operand 0']
    #allocation8 [shape = 'u8[8192]{0}', space=vmem, size = 0x2000, scoped, tag = 'output window, operand 1']
    #allocation9 [shape = 's32[2]{0}', space=sflag, size = 0x8, scoped, tag = 'scoped memory for tpu_custom_call.1']
    %10 = vsyncpa [#allocation5], 0
    %s11 = scalar_lea.sflag [#allocation5], 1
    %12 = vsyncpa %s11, 0
    %13 = vsyncpa [#allocation6], 0
    %s14 = scalar_lea.sflag [#allocation6], 1
    %15 = vsyncpa %s14, 0
    %16 = vsyncpa [#allocation9], 0
    %s17 = scalar_lea.sflag [#allocation9], 1
    %18 = vsyncpa %s17, 0
    loop: start=0, step=1, limit=4
    $region2: #{tpu_custom_call.1} parent=1 // loop_pre_header
      _
    $region3: #{tpu_custom_call.1} parent=1 // loop_header
      %s20 = sphi 0, %s24
      %p21 = scmp.ge.s32.totalorder %s20, 4
      %s27 = sphi 0, %s46
      %s28 = sphi 0, %s42
      %s29 = sphi 0, %s38
      %s30 = sphi 0, %s27
      %s31 = sphi 0, %s28
      %s32 = sphi 0, %s29
      %s33 = sphi 0, %s30
      %s34 = sphi 0, %s31
      %s35 = sphi 0, %s32
      %s47 = sphi 0, %s47
      %s49 = sphi 0, %s47
      %s50 = sphi 0, %s49
      %s64 = sphi 0, %s50
      %s74 = sphi 0, %s76
      %s77 = sphi 0, %s74
      %s78 = sphi 0, %s77
      %s94 = sphi 0, %s78
      %s104 = sphi 0, %s106
      %s107 = sphi 0, %s104
      %s108 = sphi 0, %s107
      %s124 = sphi 0, %s108
      %s132 = sphi 0, %s134
      %s135 = sphi 0, %s132
      %s136 = sphi 0, %s135
      %s152 = sphi 0, %s136
      %s160 = sphi 0, %s162
      %s163 = sphi 0, %s160
      %s164 = sphi 0, %s163
      %s180 = sphi 0, %s164
    $region4: #{tpu_custom_call.1} parent=1 // loop_header_branch
      %23 = sbr.rel (%p21) target = $region8
    $region5: #{tpu_custom_call.1} parent=1 // loop_body
      %s25 = ssub.s32 %s20, 1
      %s26 = ssub.s32 %s20, 2
      %s36 = sadd.s32 1, %s29
      %p37 = scmp.ge.s32.totalorder %s36, 1
      %s38 = scalar_select %p37, 0, %s36
      %s39 = sadd.s32 1, %s28
      %s40 = scalar_select %p37, %s39, %s28
      %p41 = scmp.ge.s32.totalorder %s40, 1
      %s42 = scalar_select %p41, 0, %s40
      %s43 = sadd.s32 1, %s27
      %s44 = scalar_select %p41, %s43, %s27
      %p45 = scmp.ge.s32.totalorder %s44, 2
      %s46 = scalar_select %p45, 0, %s44
      %s48 = sadd.s32 %s47, 1
      %p51 = scmp.eq.s32.totalorder %s20, 1
      %p52 = scmp.ne.s32.totalorder %s47, %s49
      %p53 = scmp.eq.s32.totalorder %s20, 0
      %p54 = por %p52, %p53
      %p55 = scmp.ne.s32.totalorder %s47, %s49
      %p56 = scmp.eq.s32.totalorder %s25, 1
      %p57 = por %p55, %p56
      %p58 = scmp.ne.s32.totalorder %s49, %s50
      %p59 = scmp.eq.s32.totalorder %s25, 0
      %p60 = por %p58, %p59
      %p61 = scmp.ne.s32.totalorder %s49, %s50
      %p62 = scmp.eq.s32.totalorder %s26, 1
      %p63 = por %p61, %p62
      %p65 = scmp.ne.s32.totalorder %s50, %s64
      %p66 = scmp.eq.s32.totalorder %s26, 0
      %p67 = por %p65, %p66
      %s68 = sadd.s32 %s28, %s29
      %s69 = sadd.s32 %s42, %s38
      %s70 = ssub.s32 %s27, %s46
      %s71 = ssub.s32 %s68, %s69
      %s72 = sor.u32 %s70, %s71
      %p73 = scmp.eq.s32.totalorder %s72, 0
      %s75 = sadd.s32 %s74, 1
      %s76 = scalar_select %p73, %s74, %s75
      %p79 = pneg %p73
      %p80 = scmp.eq.s32.totalorder %s20, 1
      %p81 = por %p79, %p80
      %p82 = scmp.ne.s32.totalorder %s74, %s77
      %p83 = scmp.eq.s32.totalorder %s20, 0
      %p84 = por %p82, %p83
      %p85 = scmp.ne.s32.totalorder %s74, %s77
      %p86 = scmp.eq.s32.totalorder %s25, 1
      %p87 = por %p85, %p86
      %p88 = scmp.ne.s32.totalorder %s77, %s78
      %p89 = scmp.eq.s32.totalorder %s25, 0
      %p90 = por %p88, %p89
      %p91 = scmp.ne.s32.totalorder %s77, %s78
      %p92 = scmp.eq.s32.totalorder %s26, 1
      %p93 = por %p91, %p92
      %p95 = scmp.ne.s32.totalorder %s78, %s94
      %p96 = scmp.eq.s32.totalorder %s26, 0
      %p97 = por %p95, %p96
      %s98 = sadd.s32 %s28, %s29
      %s99 = sadd.s32 %s42, %s38
      %s100 = ssub.s32 %s27, %s46
      %s101 = ssub.s32 %s98, %s99
      %s102 = sor.u32 %s100, %s101
      %p103 = scmp.eq.s32.totalorder %s102, 0
      %s105 = sadd.s32 %s104, 1
      %s106 = scalar_select %p103, %s104, %s105
      %p109 = pneg %p103
      %p110 = scmp.eq.s32.totalorder %s20, 1
      %p111 = por %p109, %p110
      %p112 = scmp.ne.s32.totalorder %s104, %s107
      %p113 = scmp.eq.s32.totalorder %s20, 0
      %p114 = por %p112, %p113
      %p115 = scmp.ne.s32.totalorder %s104, %s107
      %p116 = scmp.eq.s32.totalorder %s25, 1
      %p117 = por %p115, %p116
      %p118 = scmp.ne.s32.totalorder %s107, %s108
      %p119 = scmp.eq.s32.totalorder %s25, 0
      %p120 = por %p118, %p119
      %p121 = scmp.ne.s32.totalorder %s107, %s108
      %p122 = scmp.eq.s32.totalorder %s26, 1
      %p123 = por %p121, %p122
      %p125 = scmp.ne.s32.totalorder %s108, %s124
      %p126 = scmp.eq.s32.totalorder %s26, 0
      %p127 = por %p125, %p126
      %s128 = ssub.s32 %s27, %s46
      %s129 = ssub.s32 %s28, %s42
      %s130 = sor.u32 %s128, %s129
      %p131 = scmp.eq.s32.totalorder %s130, 0
      %s133 = sadd.s32 %s132, 1
      %s134 = scalar_select %p131, %s132, %s133
      %p137 = pneg %p131
      %p138 = scmp.eq.s32.totalorder %s20, 1
      %p139 = por %p137, %p138
      %p140 = scmp.ne.s32.totalorder %s132, %s135
      %p141 = scmp.eq.s32.totalorder %s20, 0
      %p142 = por %p140, %p141
      %p143 = scmp.ne.s32.totalorder %s132, %s135
      %p144 = scmp.eq.s32.totalorder %s25, 1
      %p145 = por %p143, %p144
      %p146 = scmp.ne.s32.totalorder %s135, %s136
      %p147 = scmp.eq.s32.totalorder %s25, 0
      %p148 = por %p146, %p147
      %p149 = scmp.ne.s32.totalorder %s135, %s136
      %p150 = scmp.eq.s32.totalorder %s26, 1
      %p151 = por %p149, %p150
      %p153 = scmp.ne.s32.totalorder %s136, %s152
      %p154 = scmp.eq.s32.totalorder %s26, 0
      %p155 = por %p153, %p154
      %s156 = ssub.s32 %s27, %s46
      %s157 = ssub.s32 %s28, %s42
      %s158 = sor.u32 %s156, %s157
      %p159 = scmp.eq.s32.totalorder %s158, 0
      %s161 = sadd.s32 %s160, 1
      %s162 = scalar_select %p159, %s160, %s161
      %p165 = pneg %p159
      %p166 = scmp.eq.s32.totalorder %s20, 1
      %p167 = por %p165, %p166
      %p168 = scmp.ne.s32.totalorder %s160, %s163
      %p169 = scmp.eq.s32.totalorder %s20, 0
      %p170 = por %p168, %p169
      %p171 = scmp.ne.s32.totalorder %s160, %s163
      %p172 = scmp.eq.s32.totalorder %s25, 1
      %p173 = por %p171, %p172
      %p174 = scmp.ne.s32.totalorder %s163, %s164
      %p175 = scmp.eq.s32.totalorder %s25, 0
      %p176 = por %p174, %p175
      %p177 = scmp.ne.s32.totalorder %s163, %s164
      %p178 = scmp.eq.s32.totalorder %s26, 1
      %p179 = por %p177, %p178
      %p181 = scmp.ne.s32.totalorder %s164, %s180
      %p182 = scmp.eq.s32.totalorder %s26, 0
      %p183 = por %p181, %p182
      %p184 = scmp.le.s32.totalorder 1, %s20
      %p185 = scmp.lt.s32.totalorder %s20, 3
      %p186 = pnand %p184, %p185
      %p187 = pneg %p186
      // Predicated region
      $region9: #{tpu_custom_call.1} parent=5 // pred_check
        _
      $region10: #{tpu_custom_call.1} parent=5 // pred_check_branch
        %189 = sbr.rel (%p186) target = $region12
      $region11: #{tpu_custom_call.1} parent=5 // pred_region
        %s190 = ssub.s32 %s20, 1
        // Predicated region
        $region13: #{tpu_custom_call.1} parent=11 // pred_check
          %p191 = pneg %p60
        $region14: #{tpu_custom_call.1} parent=11 // pred_check_branch
          %193 = sbr.rel (%p191) target = $region16
        $region15: #{tpu_custom_call.1} parent=11 // pred_region
          _
        $region16: #{tpu_custom_call.1} parent=11 // pred_fallthru
          _
      $region12: #{tpu_custom_call.1} parent=5 // pred_fallthru
        _
      %p194 = scmp.lt.s32.totalorder %s20, 2
      // Predicated region
      $region17: #{tpu_custom_call.1} parent=5 // pred_check
        %p195 = pneg %p194
      $region18: #{tpu_custom_call.1} parent=5 // pred_check_branch
        %197 = sbr.rel (%p195) target = $region20
      $region19: #{tpu_custom_call.1} parent=5 // pred_region
        // Predicated region
        $region21: #{tpu_custom_call.1} parent=19 // pred_check
          %p198 = pneg %p84
        $region22: #{tpu_custom_call.1} parent=19 // pred_check_branch
          %200 = sbr.rel (%p198) target = $region24
        $region23: #{tpu_custom_call.1} parent=19 // pred_region
          %s201 = sand.u32 %s74, 1
          %s202 = scalar_lea.sflag [#allocation5], %s201
          %s203 = sand.u32 %s74, 1
          %s204 = smul.addr %s203, 8
          %s205 = scalar_lea.vmem [#allocation4], %s204
          %s206 = sadd.s32 %s28, %s29
          %s208 = ssub.s32 128, 128
          %209 = vsyncadd %s202, %s208
          %s210 = smul.addr %s27, 4
          %s211 = sadd.s32 %s206, %s210
          %s212 = smul.addr %s211, 32
          %s213 = scalar_lea.hbm %s1, %s212
          %s214 = sshll.u32 %s205, 4
          %s215 = int_to_ptr.vmem [resolvable:$true] %s214
          %220 = dma.hbm_to_vmem [thread:$0]  %s213, 128, %s215, %s202, 32, 32, 2
        $region24: #{tpu_custom_call.1} parent=19 // pred_fallthru
          _
        // Predicated region
        $region25: #{tpu_custom_call.1} parent=19 // pred_check
          %p221 = pneg %p114
        $region26: #{tpu_custom_call.1} parent=19 // pred_check_branch
          %223 = sbr.rel (%p221) target = $region28
        $region27: #{tpu_custom_call.1} parent=19 // pred_region
          %s224 = sadd.s32 %s28, %s29
          %p225 = scmp.lt.s32.totalorder %s27, 1
          %s226 = scalar_select %p225, %s27, 1
          %p227 = scmp.lt.s32.totalorder %s224, 0
          %s228 = scalar_select %p227, %s224, 0
          %s229 = sadd.s32 %s228, %s226
          %s230 = smul.addr %s229, 2
          %s231 = scalar_lea.vmem %s2, %s230
          %s232 = sadd.s32 %s28, %s29
        $region28: #{tpu_custom_call.1} parent=19 // pred_fallthru
          _
      $region20: #{tpu_custom_call.1} parent=5 // pred_fallthru
        _
      %p233 = scmp.le.s32.totalorder 1, %s20
      %p234 = scmp.lt.s32.totalorder %s20, 3
      %p235 = pnand %p233, %p234
      %p236 = pneg %p235
      // Predicated region
      $region29: #{tpu_custom_call.1} parent=5 // pred_check
        _
      $region30: #{tpu_custom_call.1} parent=5 // pred_check_branch
        %238 = sbr.rel (%p235) target = $region32
      $region31: #{tpu_custom_call.1} parent=5 // pred_region
        %s239 = ssub.s32 %s20, 1
        %s240 = sand.u32 %s77, 1
        %s241 = scalar_lea.sflag [#allocation5], %s240
        %s242 = sand.u32 %s77, 1
        %s243 = smul.addr %s242, 8
        %s244 = scalar_lea.vmem [#allocation4], %s243
        // Predicated region
        $region33: #{tpu_custom_call.1} parent=31 // pred_check
          %p245 = pneg %p90
        $region34: #{tpu_custom_call.1} parent=31 // pred_check_branch
          %247 = sbr.rel (%p245) target = $region36
        $region35: #{tpu_custom_call.1} parent=31 // pred_region
          %248 = dma.done %s241, 128
        $region36: #{tpu_custom_call.1} parent=31 // pred_fallthru
          _
        %p249 = pneg %p60
        %p250 = pneg %p57
        %s251 = sand.u32 %s77, 1
        %s252 = scalar_lea.sflag [#allocation5], %s251
        %s253 = sand.u32 %s77, 1
        %s254 = smul.addr %s253, 8
        %s255 = scalar_lea.vmem [#allocation4], %s254
        %p256 = pneg %p90
        %p257 = pneg %p87
        %s258 = sadd.s32 %s31, %s32
        %p259 = scmp.lt.s32.totalorder %s30, 1
        %s260 = scalar_select %p259, %s30, 1
        %p261 = scmp.lt.s32.totalorder %s258, 0
        %s262 = scalar_select %p261, %s258, 0
        %s263 = sadd.s32 %s262, %s260
        %s264 = smul.addr %s263, 2
        %s265 = scalar_lea.vmem %s2, %s264
        %p266 = pneg %p120
        %p267 = pneg %p117
        %p268 = pneg %p148
        %p269 = pneg %p145
        %s270 = sand.u32 %s135, 1
        %s271 = scalar_lea.sflag [#allocation6], %s270
        %s272 = sand.u32 %s135, 1
        %s273 = smul.addr %s272, 8
        %s274 = scalar_lea.vmem [#allocation7], %s273
        %p275 = pneg %p176
        %p276 = pneg %p173
        %s277 = sand.u32 %s163, 1
        %s278 = scalar_lea.sflag [#allocation9], %s277
        %s279 = sand.u32 %s163, 1
        %s280 = smul.addr %s279, 8
        %s281 = scalar_lea.vmem [#allocation8], %s280
        %s282 = sadd.s32 %s31, %s32
        %s283 = sadd.s32 %s31, %s32
        %p284 = scmp.lt.s32.totalorder %s30, 1
        %s285 = scalar_select %p284, %s30, 1
        %p286 = scmp.lt.s32.totalorder %s283, 0
        %s287 = scalar_select %p286, %s283, 0
        %s288 = sadd.s32 %s287, %s285
        %s289 = smul.addr %s288, 2
        %s290 = scalar_lea.vmem %s2, %s289
        %s291 = sadd.s32 %s31, %s32
        %p292 = scmp.eq.s32.totalorder %s32, 0
        // Predicated region
        $region37: #{tpu_custom_call.1} parent=31 // pred_check
          %p293 = pneg %p292
        $region38: #{tpu_custom_call.1} parent=31 // pred_check_branch
          %295 = sbr.rel (%p293) target = $region40
        $region39: #{tpu_custom_call.1} parent=31 // pred_region
          %296 = vst [vmem:[#allocation2] sm:$0x3] 0.0
          %297 = vst [vmem:[#allocation3] sm:$0x3] 0.0
        $region40: #{tpu_custom_call.1} parent=31 // pred_fallthru
          _
        %v298 = vld [vmem:[%s244] sm:$0x3]
        %v299 = vld [vmem:[%s244 + $0x2] sm:$0x3]
        %v300 = vld [vmem:[%s244 + $0x4] sm:$0x3]
        %v301 = vld [vmem:[%s244 + $0x6] sm:$0x3]
        %v302 = vld [vmem:[%s290] sm:$0x3]
        %vm303 = vcmask 1041408
        %v304 = vsel %vm303, %v298, -inf
        %v305 = vsel %vm303, %v299, -inf
        %v306 = vsel %vm303, %v300, -inf
        %v307 = vsel %vm303, %v301, -inf
        %v308 = vmax.f32 %v304, %v305
        %v309 = vmax.f32 %v306, %v307
        %v310 = vmax.f32 %v308, %v309
        %v311 = vsub.f32 %v298, %v310
        %v312 = vsub.f32 %v299, %v310
        %v313 = vsub.f32 %v300, %v310
        %v314 = vsub.f32 %v301, %v310
        %v315 = vmul.f32 %v311, 1.442695
        %v316 = vpow.pop %v315
        %v317 = vmul.f32 %v312, 1.442695
        %v318 = vpow.pop %v317
        %v319 = vmul.f32 %v313, 1.442695
        %v320 = vpow.pop %v319
        %v321 = vmul.f32 %v314, 1.442695
        %v322 = vpow.pop %v321
        %v323 = vsel %vm303, %v316, 0.0
        %v324 = vsel %vm303, %v318, 0.0
        %v325 = vadd.f32 %v323, %v324
        %v326 = vsel %vm303, %v320, 0.0
        %v327 = vadd.f32 %v325, %v326
        %v328 = vsel %vm303, %v322, 0.0
        %v329 = vadd.f32 %v327, %v328
        %v330 = vlog2.pop %v329
        %v331 = vmul.f32 %v330, 0.6931472
        %vm332 = vcmp.eq.s32.totalorder %v302, 0
        %vm333 = vcmp.eq.s32.totalorder %v302, 1
        %vm334 = vcmp.eq.s32.totalorder %v302, 2
        %vm335 = vcmp.eq.s32.totalorder %v302, 3
        %v336 = vsel %vm332, %v311, 0.0
        %v337 = vsel %vm333, %v312, 0.0
        %v338 = vsel %vm334, %v313, 0.0
        %v339 = vsel %vm335, %v314, 0.0
        %v340 = vsel %vm303, %v336, 0.0
        %v341 = vsel %vm303, %v337, 0.0
        %v342 = vadd.f32 %v340, %v341
        %v343 = vsel %vm303, %v338, 0.0
        %v344 = vadd.f32 %v342, %v343
        %v345 = vsel %vm303, %v339, 0.0
        %v346 = vadd.f32 %v344, %v345
        %v347 = vld [vmem:[%s0] sm:$0x1]
        %v348 = vld [vmem:[%s0 + $0x1] sm:$0x1]
        %v349 = vld [vmem:[%s0 + $0x2] sm:$0x1]
        %v350 = vld [vmem:[%s0 + $0x3] sm:$0x1]
        %v355 = vlaneseq
        %v356 = vshrl.u32 %v355, 7
        %v357 = vsub.s32 0, %v356
        %v358 = vrot.slane %v347, %v357
        %v359 = vlaneseq
        %v360 = vshrl.u32 %v359, 7
        %v361 = vsub.s32 0, %v360
        %v362 = vrot.slane %v348, %v361
        %v363 = vlaneseq
        %v364 = vshrl.u32 %v363, 7
        %v365 = vsub.s32 0, %v364
        %v366 = vrot.slane %v349, %v365
        %v367 = vlaneseq
        %v368 = vshrl.u32 %v367, 7
        %v369 = vsub.s32 0, %v368
        %v370 = vrot.slane %v350, %v369
        %371 = vset.pattern.permute.xlu0 0
        %372 = vperm.xlu0 %371, %v358
        %v373 = vpop.permute.xlu0 %372
        %375 = vset.pattern.permute.xlu0 0
        %376 = vperm.xlu0 %375, %v362
        %v377 = vpop.permute.xlu0 %376
        %379 = vset.pattern.permute.xlu0 0
        %380 = vperm.xlu0 %379, %v366
        %v381 = vpop.permute.xlu0 %380
        %383 = vset.pattern.permute.xlu0 0
        %384 = vperm.xlu0 %383, %v370
        %v385 = vpop.permute.xlu0 %384
        %v387 = vsel %vm332, %v373, 0.0
        %v388 = vsel %vm333, %v377, 0.0
        %v389 = vsel %vm334, %v381, 0.0
        %v390 = vsel %vm335, %v385, 0.0
        %v391 = vsel %vm303, %v387, 0.0
        %v392 = vsel %vm303, %v388, 0.0
        %v393 = vadd.f32 %v391, %v392
        %v394 = vsel %vm303, %v389, 0.0
        %v395 = vadd.f32 %v393, %v394
        %v396 = vsel %vm303, %v390, 0.0
        %v397 = vadd.f32 %v395, %v396
        %v398 = vsub.f32 %v346, %v331
        %v399 = vcvt.s32.f32 %v302
        %v400 = vld [vmem:[#allocation2] sm:$0x3]
        %v401 = vsub.f32 0.0, %v397
        %v402 = vmul.f32 %v401, %v398
        %v403 = vmul.f32 %v402, %v399
        %v404 = vadd.f32 %v400, %v403
        %405 = vst [vmem:[#allocation2] sm:$0x3] %v404
        %v406 = vld [vmem:[#allocation3] sm:$0x3]
        %v407 = vadd.f32 %v406, %v399
        %408 = vst [vmem:[#allocation3] sm:$0x3] %v407
        // Predicated region
        $region41: #{tpu_custom_call.1} parent=31 // pred_check
          %p409 = pneg %p292
        $region42: #{tpu_custom_call.1} parent=31 // pred_check_branch
          %411 = sbr.rel (%p409) target = $region44
        $region43: #{tpu_custom_call.1} parent=31 // pred_region
          %v412 = vld [vmem:[#allocation2] sm:$0x3]
          %v413 = vsel %vm303, %v412, 0.0
          %414 = vadd.xlane.f32.xlu0 %v413
          %v415 = vpop.xlane.xlu0 %414
          %v416 = vrot.slane %v415, 4
          %v417 = vadd.f32 %v415, %v416
          %v418 = vrot.slane %v417, 2
          %v419 = vadd.f32 %v417, %v418
          %v420 = vrot.slane %v419, 1
          %v421 = vadd.f32 %v419, %v420
          %s422 = vtos %v421
          %v423 = vstv %s422
          %424 = vst [vmem:[%s274] sm:$0xff] %v423
          %v425 = vld [vmem:[#allocation3] sm:$0x3]
          %v426 = vsel %vm303, %v425, 0.0
          %427 = vadd.xlane.f32.xlu0 %v426
          %v428 = vpop.xlane.xlu0 %427
          %v429 = vrot.slane %v428, 4
          %v430 = vadd.f32 %v428, %v429
          %v431 = vrot.slane %v430, 2
          %v432 = vadd.f32 %v430, %v431
          %v433 = vrot.slane %v432, 1
          %v434 = vadd.f32 %v432, %v433
          %s435 = vtos %v434
          %v436 = vstv %s435
          %437 = vst [vmem:[%s281] sm:$0xff] %v436
        $region44: #{tpu_custom_call.1} parent=31 // pred_fallthru
          _
        %s438 = sand.u32 %s135, 1
        %s439 = scalar_lea.sflag [#allocation6], %s438
        %s440 = sand.u32 %s135, 1
        %s441 = smul.addr %s440, 8
        %s442 = scalar_lea.vmem [#allocation7], %s441
        %s443 = sand.u32 %s163, 1
        %s444 = scalar_lea.sflag [#allocation9], %s443
        %s445 = sand.u32 %s163, 1
        %s446 = smul.addr %s445, 8
        %s447 = scalar_lea.vmem [#allocation8], %s446
        // Predicated region
        $region45: #{tpu_custom_call.1} parent=31 // pred_check
          %p448 = pneg %p145
        $region46: #{tpu_custom_call.1} parent=31 // pred_check_branch
          %450 = sbr.rel (%p448) target = $region48
        $region47: #{tpu_custom_call.1} parent=31 // pred_region
          %s452 = ssub.s32 128, 128
          %453 = vsyncadd %s439, %s452
          %s454 = sadd.s32 %s31, %s30
          %s455 = smul.addr %s454, 128
          %s456 = scalar_lea.hbm %s3, %s455
          %s458 = sshll.u32 %s442, 4
          %s459 = int_to_ptr.vmem [resolvable:$true] %s458
          %461 = dma.vmem_to_hbm [thread:$0]  %s459, 128, %s456, %s439
        $region48: #{tpu_custom_call.1} parent=31 // pred_fallthru
          _
        // Predicated region
        $region49: #{tpu_custom_call.1} parent=31 // pred_check
          %p462 = pneg %p173
        $region50: #{tpu_custom_call.1} parent=31 // pred_check_branch
          %464 = sbr.rel (%p462) target = $region52
        $region51: #{tpu_custom_call.1} parent=31 // pred_region
          %s466 = ssub.s32 128, 128
          %467 = vsyncadd %s444, %s466
          %s468 = sadd.s32 %s31, %s30
          %s469 = smul.addr %s468, 128
          %s470 = scalar_lea.hbm %s4, %s469
          %s472 = sshll.u32 %s447, 4
          %s473 = int_to_ptr.vmem [resolvable:$true] %s472
          %475 = dma.vmem_to_hbm [thread:$0]  %s473, 128, %s470, %s444
        $region52: #{tpu_custom_call.1} parent=31 // pred_fallthru
          _
      $region32: #{tpu_custom_call.1} parent=5 // pred_fallthru
        _
      %p476 = scmp.le.s32.totalorder 2, %s20
      // Predicated region
      $region53: #{tpu_custom_call.1} parent=5 // pred_check
        %p477 = pneg %p476
      $region54: #{tpu_custom_call.1} parent=5 // pred_check_branch
        %479 = sbr.rel (%p477) target = $region56
      $region55: #{tpu_custom_call.1} parent=5 // pred_region
        %s480 = ssub.s32 %s20, 2
        // Predicated region
        $region57: #{tpu_custom_call.1} parent=55 // pred_check
          %p481 = pneg %p151
        $region58: #{tpu_custom_call.1} parent=55 // pred_check_branch
          %483 = sbr.rel (%p481) target = $region60
        $region59: #{tpu_custom_call.1} parent=55 // pred_region
          %s484 = sand.u32 %s136, 1
          %s485 = scalar_lea.sflag [#allocation6], %s484
          %s486 = sand.u32 %s136, 1
          %s487 = smul.addr %s486, 8
          %s488 = scalar_lea.vmem [#allocation7], %s487
          %489 = dma.done %s485, 128
        $region60: #{tpu_custom_call.1} parent=55 // pred_fallthru
          _
        // Predicated region
        $region61: #{tpu_custom_call.1} parent=55 // pred_check
          %p490 = pneg %p179
        $region62: #{tpu_custom_call.1} parent=55 // pred_check_branch
          %492 = sbr.rel (%p490) target = $region64
        $region63: #{tpu_custom_call.1} parent=55 // pred_region
          %s493 = sand.u32 %s164, 1
          %s494 = scalar_lea.sflag [#allocation9], %s493
          %s495 = sand.u32 %s164, 1
          %s496 = smul.addr %s495, 8
          %s497 = scalar_lea.vmem [#allocation8], %s496
          %498 = dma.done %s494, 128
        $region64: #{tpu_custom_call.1} parent=55 // pred_fallthru
          _
      $region56: #{tpu_custom_call.1} parent=5 // pred_fallthru
        _
    $region6: #{tpu_custom_call.1} parent=1 // loop_footer
      %s24 = sadd.s32 1, %s20
    $region7: #{tpu_custom_call.1} parent=1 // loop_footer_branch
      %19 = sbr.rel target = $region3
    $region8: #{tpu_custom_call.1} parent=1 // loop_exit
      _
    %499 = vsyncpa [#allocation5], 1
    %s500 = scalar_lea.sflag [#allocation5], 1
    %501 = vsyncpa %s500, 1
    %502 = vsyncpa [#allocation6], 1
    %s503 = scalar_lea.sflag [#allocation6], 1
    %504 = vsyncpa %s503, 1
    %505 = vsyncpa [#allocation9], 1
    %s506 = scalar_lea.sflag [#allocation9], 1
    %507 = vsyncpa %s506, 1

</llo_original>
